<compile_context>
chip_gen: v7x
topology: tpu7x:2x2x1
jax: 0.10.0
libtpu: 0.0.40
codegen_flags: <defaults>
</compile_context>

<pallas_src>
import jax
import jax.numpy as jnp
from jax.experimental import pallas as pl
from jax.experimental.pallas import tpu as pltpu

T = 1000
HIDDEN = 128


def _round_up(n, m):
    return ((n + m - 1) // m) * m


def _cdiv(a, b):
    return (a + b - 1) // b


def mlp_kernel(x_ref, t_ref, w1x_ref, w1t_ref, b1_ref, w2_ref, b2_ref,
               w3_ref, b3_ref, o_ref):
    # x_ref : (tm, D)   f32       t_ref : (tm, 1) f32
    # w1x   : (D, 128)  bf16      w1t   : (1, 128) f32 (rank-1 timestep term)
    # w2    : (128,128) bf16      w3    : (128, D) bf16
    # biases: (1, H)    f32       o_ref : (tm, D)  f32
    x = x_ref[...].astype(jnp.bfloat16)   # cast on VPU (huge slack), no wrapper pass
    # Fused timestep feature: concat([x, t/T], -1) @ W1 == x@W1[:D] + (t/T)*W1[D:]
    h1 = jnp.dot(x, w1x_ref[...], preferred_element_type=jnp.float32)
    h1 = h1 + t_ref[...] * w1t_ref[...] + b1_ref[...]
    h1 = jnp.maximum(h1, 0.0)

    h2 = jnp.dot(h1.astype(jnp.bfloat16), w2_ref[...],
                 preferred_element_type=jnp.float32) + b2_ref[...]
    h2 = jnp.maximum(h2, 0.0)

    o_ref[...] = jnp.dot(h2.astype(jnp.bfloat16), w3_ref[...],
                         preferred_element_type=jnp.float32) + b3_ref[...]


def init_params(key, input_dim):
    """Deterministic init matching nn.Linear shapes (uniform, 1/sqrt(fan_in) bound)."""
    dims = [(input_dim + 1, HIDDEN), (HIDDEN, HIDDEN), (HIDDEN, input_dim)]
    params = []
    for fan_in, fan_out in dims:
        kw, kb, key = jax.random.split(key, 3)
        bound = 1.0 / jnp.sqrt(fan_in)
        w = jax.random.uniform(kw, (fan_in, fan_out), jnp.float32, -bound, bound)
        b = jax.random.uniform(kb, (1, fan_out), jnp.float32, -bound, bound)
        params.append((w, b))
    return params


def prepare_params(params, input_dim):
    """One-time weight prep: W1 split + bf16 casts, hoisted off the per-call path.

    Note: matmul weights (and x) are rounded to bf16 inside the kernel path;
    accumulation stays f32. This deviates from the f32 PyTorch module at the
    ~1e-2 relative level (see the two reference checks below).
    """
    (w1, b1), (w2, b2), (w3, b3) = params
    D = input_dim
    return dict(
        w1x=w1[:D].astype(jnp.bfloat16),              # (D, 128)   x part -> MXU
        w1t=w1[D:].astype(jnp.float32),               # (1, 128)   t/T part -> VPU
        b1=b1.reshape(1, HIDDEN).astype(jnp.float32),
        w2=w2.astype(jnp.bfloat16),
        b2=b2.reshape(1, HIDDEN).astype(jnp.float32),
        w3=w3.astype(jnp.bfloat16),
        b3=b3.reshape(1, D).astype(jnp.float32),
    )


def _choose_tile(B, block_b):
    """Pick the batch tile: as big as block_b allows, >=2 grid steps when B is
    large enough (v7x megacore), padding bounded to < one sublane-pack group."""
    steps = max(1, _cdiv(B, block_b))
    if B >= 256 and steps < 2:       # keep both v7x TensorCores busy
        steps = 2
    tm = max(16, _round_up(_cdiv(B, steps), 16))   # 16-row bf16 sublane pack
    return tm


def denoise_mlp(x, t, prep, *, block_b=4096):
    """x: (B, D) float32, t: (B,) int/float timesteps. Returns (B, D) float32.

    `prep` is the output of prepare_params(). block_b: max rows per grid step
    (multiple of 16); sweep 2048-8192 for large-B throughput.
    """
    assert block_b % 16 == 0 and block_b >= 16
    B, D = x.shape
    assert prep["w1x"].shape == (D, HIDDEN)

    t_feat = (t.astype(jnp.float32) / T).reshape(B, 1)

    tm = _choose_tile(B, block_b)
    Bp = _round_up(B, tm)
    if Bp != B:
        x = jnp.pad(x, ((0, Bp - B), (0, 0)))
        t_feat = jnp.pad(t_feat, ((0, Bp - B), (0, 0)))

    grid = (Bp // tm,)
    batch = lambda i: (i, 0)   # x / t / out: walk the batch axis
    const = lambda i: (0, 0)   # weights/biases: fetched once, VMEM-resident

    flops = 2 * Bp * (D * HIDDEN + HIDDEN * HIDDEN + HIDDEN * D)
    bytes_accessed = (Bp * D * 4 + Bp * 4 + Bp * D * 4            # x f32 in, t, out f32
                      + (D * HIDDEN + HIDDEN * HIDDEN + HIDDEN * D) * 2   # bf16 weights
                      + (3 * HIDDEN + D) * 4)                              # f32 biases + w1t

    # VMEM budget: double-buffered x/t/out tiles (narrow minor dims assumed
    # lane-padded to 128) + f32 h1/h2 temps + resident weights, with headroom.
    vmem_bytes = (2 * tm * 128 * 4          # x tiles
                  + 2 * tm * 128 * 4        # t tiles (lane-padded)
                  + 2 * tm * 128 * 4        # out tiles
                  + 4 * tm * HIDDEN * 4     # h1/h2 temps + slack
                  + 4 * (D * HIDDEN + HIDDEN * HIDDEN + HIDDEN * 128 + 4 * 128))
    vmem_limit = int(min(64 * 1024 * 1024, max(32 * 1024 * 1024, vmem_bytes)))

    out = pl.pallas_call(
        mlp_kernel,
        out_shape=jax.ShapeDtypeStruct((Bp, D), jnp.float32),
        grid=grid,
        in_specs=[
            pl.BlockSpec((tm, D), batch),           # x tile (f32)
            pl.BlockSpec((tm, 1), batch),           # t/T tile (f32)
            pl.BlockSpec((D, HIDDEN), const),       # w1x (bf16)
            pl.BlockSpec((1, HIDDEN), const),       # w1t (f32)
            pl.BlockSpec((1, HIDDEN), const),       # b1  (f32)
            pl.BlockSpec((HIDDEN, HIDDEN), const),  # w2  (bf16)
            pl.BlockSpec((1, HIDDEN), const),       # b2  (f32)
            pl.BlockSpec((HIDDEN, D), const),       # w3  (bf16)
            pl.BlockSpec((1, D), const),            # b3  (f32)
        ],
        out_specs=pl.BlockSpec((tm, D), batch),
        compiler_params=pltpu.CompilerParams(
            dimension_semantics=("parallel",),
            vmem_limit_bytes=vmem_limit),
        cost_estimate=pl.CostEstimate(
            flops=flops, transcendentals=0, bytes_accessed=bytes_accessed),
    )(x, t_feat, prep["w1x"], prep["w1t"], prep["b1"],
      prep["w2"], prep["b2"], prep["w3"], prep["b3"])

    return out[:B] if Bp != B else out


def denoise_mlp_ref_f32(x, t, params):
    """Faithful f32 reference of the PyTorch module."""
    t_feat = (t.astype(jnp.float32) / T)[:, None]
    h = jnp.concatenate([x, t_feat], axis=1)
    (w1, b1), (w2, b2), (w3, b3) = params
    h = jnp.maximum(h @ w1 + b1, 0.0)
    h = jnp.maximum(h @ w2 + b2, 0.0)
    return h @ w3 + b3


def denoise_mlp_ref_bf16(x, t, params):
    """Reference matching the kernel's numerics (bf16 operands, f32 accumulation)."""
    D = x.shape[1]
    (w1, b1), (w2, b2), (w3, b3) = params
    t_feat = (t.astype(jnp.float32) / T)[:, None]
    h = jnp.dot(x.astype(jnp.bfloat16), w1[:D].astype(jnp.bfloat16),
                preferred_element_type=jnp.float32)
    h = jnp.maximum(h + t_feat * w1[D:] + b1, 0.0)
    h = jnp.dot(h.astype(jnp.bfloat16), w2.astype(jnp.bfloat16),
                preferred_element_type=jnp.float32) + b2
    h = jnp.maximum(h, 0.0)
    return jnp.dot(h.astype(jnp.bfloat16), w3.astype(jnp.bfloat16),
                   preferred_element_type=jnp.float32) + b3


if __name__ == "__main__":
    key = jax.random.PRNGKey(0)
    kx, kt, kp = jax.random.split(key, 3)

    B, D = 8, 16
    x = jax.random.normal(kx, (B, D), jnp.float32)
    t = jax.random.randint(kt, (B,), 0, T)
    params = init_params(kp, D)
    prep = prepare_params(params, D)

    out = jax.block_until_ready(denoise_mlp(x, t, prep))
    assert out.shape == (B, D)
    # Tight check vs a numerics-matched (bf16 operand / f32 accumulate) reference.
    assert jnp.allclose(out, denoise_mlp_ref_bf16(x, t, params), atol=1e-4, rtol=1e-4)
    # Looser check vs the faithful f32 reference (bf16 rounding of x / weights).
    assert jnp.allclose(out, denoise_mlp_ref_f32(x, t, params), atol=3e-2, rtol=3e-2)

    # Multi-tile grid + batch padding path at a 16-row tile (bf16 sublane pack).
    B2 = 20
    x2 = jax.random.normal(jax.random.PRNGKey(1), (B2, D), jnp.float32)
    t2 = jax.random.randint(jax.random.PRNGKey(2), (B2,), 0, T)
    out2 = jax.block_until_ready(denoise_mlp(x2, t2, prep, block_b=16))
    assert out2.shape == (B2, D)
    assert jnp.allclose(out2, denoise_mlp_ref_bf16(x2, t2, params), atol=1e-4, rtol=1e-4)

    # Grid>=2 guard path (B >= 256 forces at least two grid steps even when
    # block_b would otherwise collapse the grid to one step).
    B3 = 300
    x3 = jax.random.normal(jax.random.PRNGKey(3), (B3, D), jnp.float32)
    t3 = jax.random.randint(jax.random.PRNGKey(4), (B3,), 0, T)
    out3 = jax.block_until_ready(denoise_mlp(x3, t3, prep))
    assert out3.shape == (B3, D)
    assert jnp.allclose(out3, denoise_mlp_ref_bf16(x3, t3, params), atol=1e-4, rtol=1e-4)

    print("KERNEL_OK")
</pallas_src>

<mosaic_0001>
module attributes {stable_mosaic.version = 11 : i64} {
  func.func @mlp_kernel(%arg0: i32, %arg1: memref<16x16xf32, #tpu.memory_space<vmem>>, %arg2: memref<16x1xf32, #tpu.memory_space<vmem>>, %arg3: memref<16x128xbf16, #tpu.memory_space<vmem>>, %arg4: memref<1x128xf32, #tpu.memory_space<vmem>>, %arg5: memref<1x128xf32, #tpu.memory_space<vmem>>, %arg6: memref<128x128xbf16, #tpu.memory_space<vmem>>, %arg7: memref<1x128xf32, #tpu.memory_space<vmem>>, %arg8: memref<128x16xbf16, #tpu.memory_space<vmem>>, %arg9: memref<1x16xf32, #tpu.memory_space<vmem>>, %arg10: memref<16x16xf32, #tpu.memory_space<vmem>>) attributes {dimension_semantics = [#tpu.dimension_semantics<parallel>], iteration_bounds = array<i64: 1>, scalar_prefetch = 0 : i64, scratch_operands = 0 : i64, tpu.core_type = #tpu.core_type<tc>, window_params = [{transform_indices = @transform_0, window_bounds = array<i64: 16, 16>}, {transform_indices = @transform_1, window_bounds = array<i64: 16, 1>}, {pipeline_mode = #tpu.pipeline_mode<synchronous>, transform_indices = @transform_2, window_bounds = array<i64: 16, 128>}, {pipeline_mode = #tpu.pipeline_mode<synchronous>, transform_indices = @transform_3, window_bounds = array<i64: 1, 128>}, {pipeline_mode = #tpu.pipeline_mode<synchronous>, transform_indices = @transform_4, window_bounds = array<i64: 1, 128>}, {pipeline_mode = #tpu.pipeline_mode<synchronous>, transform_indices = @transform_5, window_bounds = array<i64: 128, 128>}, {pipeline_mode = #tpu.pipeline_mode<synchronous>, transform_indices = @transform_6, window_bounds = array<i64: 1, 128>}, {pipeline_mode = #tpu.pipeline_mode<synchronous>, transform_indices = @transform_7, window_bounds = array<i64: 128, 16>}, {pipeline_mode = #tpu.pipeline_mode<synchronous>, transform_indices = @transform_8, window_bounds = array<i64: 1, 16>}, {transform_indices = @transform_9, window_bounds = array<i64: 16, 16>}]} {
    %c0 = arith.constant 0 : index
    %c0_0 = arith.constant 0 : index
    %0 = vector.load %arg1[%c0, %c0_0] : memref<16x16xf32, #tpu.memory_space<vmem>>, vector<16x16xf32>
    %1 = arith.truncf %0 : vector<16x16xf32> to vector<16x16xbf16>
    %c0_1 = arith.constant 0 : index
    %c0_2 = arith.constant 0 : index
    %2 = vector.load %arg3[%c0_1, %c0_2] : memref<16x128xbf16, #tpu.memory_space<vmem>>, vector<16x128xbf16>
    %cst = arith.constant dense<0.000000e+00> : vector<16x128xf32>
    %3 = tpu.matmul %1, %2, %cst {dimension_numbers = #tpu.dot_dimension_numbers<[1], [0], [0], [1], [0, 0, 1, 1], [], []>} : vector<16x16xbf16>, vector<16x128xbf16>, vector<16x128xf32> -> vector<16x128xf32>
    %c0_3 = arith.constant 0 : index
    %c0_4 = arith.constant 0 : index
    %4 = vector.load %arg2[%c0_3, %c0_4] : memref<16x1xf32, #tpu.memory_space<vmem>>, vector<16x1xf32>
    %c0_5 = arith.constant 0 : index
    %c0_6 = arith.constant 0 : index
    %5 = vector.load %arg4[%c0_5, %c0_6] : memref<1x128xf32, #tpu.memory_space<vmem>>, vector<1x128xf32>
    %6 = vector.broadcast %4 : vector<16x1xf32> to vector<16x128xf32>
    %7 = vector.broadcast %5 : vector<1x128xf32> to vector<16x128xf32>
    %8 = arith.mulf %6, %7 : vector<16x128xf32>
    %9 = arith.addf %3, %8 : vector<16x128xf32>
    %c0_7 = arith.constant 0 : index
    %c0_8 = arith.constant 0 : index
    %10 = vector.load %arg5[%c0_7, %c0_8] : memref<1x128xf32, #tpu.memory_space<vmem>>, vector<1x128xf32>
    %11 = vector.broadcast %10 : vector<1x128xf32> to vector<16x128xf32>
    %12 = arith.addf %9, %11 : vector<16x128xf32>
    %cst_9 = arith.constant 0.000000e+00 : f32
    %13 = vector.broadcast %cst_9 : f32 to vector<16x128xf32>
    %14 = arith.maximumf %12, %13 : vector<16x128xf32>
    %15 = arith.truncf %14 : vector<16x128xf32> to vector<16x128xbf16>
    %c0_10 = arith.constant 0 : index
    %c0_11 = arith.constant 0 : index
    %16 = vector.load %arg6[%c0_10, %c0_11] : memref<128x128xbf16, #tpu.memory_space<vmem>>, vector<128x128xbf16>
    %cst_12 = arith.constant dense<0.000000e+00> : vector<16x128xf32>
    %17 = tpu.matmul %15, %16, %cst_12 {dimension_numbers = #tpu.dot_dimension_numbers<[1], [0], [0], [1], [0, 0, 1, 1], [], []>} : vector<16x128xbf16>, vector<128x128xbf16>, vector<16x128xf32> -> vector<16x128xf32>
    %c0_13 = arith.constant 0 : index
    %c0_14 = arith.constant 0 : index
    %18 = vector.load %arg7[%c0_13, %c0_14] : memref<1x128xf32, #tpu.memory_space<vmem>>, vector<1x128xf32>
    %19 = vector.broadcast %18 : vector<1x128xf32> to vector<16x128xf32>
    %20 = arith.addf %17, %19 : vector<16x128xf32>
    %cst_15 = arith.constant 0.000000e+00 : f32
    %21 = vector.broadcast %cst_15 : f32 to vector<16x128xf32>
    %22 = arith.maximumf %20, %21 : vector<16x128xf32>
    %23 = arith.truncf %22 : vector<16x128xf32> to vector<16x128xbf16>
    %c0_16 = arith.constant 0 : index
    %c0_17 = arith.constant 0 : index
    %24 = vector.load %arg8[%c0_16, %c0_17] : memref<128x16xbf16, #tpu.memory_space<vmem>>, vector<128x16xbf16>
    %cst_18 = arith.constant dense<0.000000e+00> : vector<16x16xf32>
    %25 = tpu.matmul %23, %24, %cst_18 {dimension_numbers = #tpu.dot_dimension_numbers<[1], [0], [0], [1], [0, 0, 1, 1], [], []>} : vector<16x128xbf16>, vector<128x16xbf16>, vector<16x16xf32> -> vector<16x16xf32>
    %c0_19 = arith.constant 0 : index
    %c0_20 = arith.constant 0 : index
    %26 = vector.load %arg9[%c0_19, %c0_20] : memref<1x16xf32, #tpu.memory_space<vmem>>, vector<1x16xf32>
    %27 = vector.broadcast %26 : vector<1x16xf32> to vector<16x16xf32>
    %28 = arith.addf %25, %27 : vector<16x16xf32>
    %c0_21 = arith.constant 0 : index
    %c0_22 = arith.constant 0 : index
    %29 = vector.load %arg10[%c0_21, %c0_22] : memref<16x16xf32, #tpu.memory_space<vmem>>, vector<16x16xf32>
    tpu.vector_store %arg10[%c0_21, %c0_22], %28 {strides = array<i32>} : memref<16x16xf32, #tpu.memory_space<vmem>>, vector<16x16xf32>,
    return
  }
  func.func @transform_0(%arg0: i32) -> (i32, i32) {
    %c0_i32 = arith.constant 0 : i32
    %c0_i32_0 = arith.constant 0 : i32
    return %arg0, %c0_i32 : i32, i32
  }
  func.func @transform_1(%arg0: i32) -> (i32, i32) {
    %c0_i32 = arith.constant 0 : i32
    %c0_i32_0 = arith.constant 0 : i32
    return %arg0, %c0_i32 : i32, i32
  }
  func.func @transform_2(%arg0: i32) -> (i32, i32) {
    %c0_i32 = arith.constant 0 : i32
    %c0_i32_0 = arith.constant 0 : i32
    %c0_i32_1 = arith.constant 0 : i32
    return %c0_i32, %c0_i32_0 : i32, i32
  }
  func.func @transform_3(%arg0: i32) -> (i32, i32) {
    %c0_i32 = arith.constant 0 : i32
    %c0_i32_0 = arith.constant 0 : i32
    %c0_i32_1 = arith.constant 0 : i32
    return %c0_i32, %c0_i32_0 : i32, i32
  }
  func.func @transform_4(%arg0: i32) -> (i32, i32) {
    %c0_i32 = arith.constant 0 : i32
    %c0_i32_0 = arith.constant 0 : i32
    %c0_i32_1 = arith.constant 0 : i32
    return %c0_i32, %c0_i32_0 : i32, i32
  }
  func.func @transform_5(%arg0: i32) -> (i32, i32) {
    %c0_i32 = arith.constant 0 : i32
    %c0_i32_0 = arith.constant 0 : i32
    %c0_i32_1 = arith.constant 0 : i32
    return %c0_i32, %c0_i32_0 : i32, i32
  }
  func.func @transform_6(%arg0: i32) -> (i32, i32) {
    %c0_i32 = arith.constant 0 : i32
    %c0_i32_0 = arith.constant 0 : i32
    %c0_i32_1 = arith.constant 0 : i32
    return %c0_i32, %c0_i32_0 : i32, i32
  }
  func.func @transform_7(%arg0: i32) -> (i32, i32) {
    %c0_i32 = arith.constant 0 : i32
    %c0_i32_0 = arith.constant 0 : i32
    %c0_i32_1 = arith.constant 0 : i32
    return %c0_i32, %c0_i32_0 : i32, i32
  }
  func.func @transform_8(%arg0: i32) -> (i32, i32) {
    %c0_i32 = arith.constant 0 : i32
    %c0_i32_0 = arith.constant 0 : i32
    %c0_i32_1 = arith.constant 0 : i32
    return %c0_i32, %c0_i32_0 : i32, i32
  }
  func.func @transform_9(%arg0: i32) -> (i32, i32) {
    %c0_i32 = arith.constant 0 : i32
    %c0_i32_0 = arith.constant 0 : i32
    return %arg0, %c0_i32 : i32, i32
  }
}

</mosaic_0001>

<llo_original>
// kernel: tpu_custom_call.1
$region0: #{tpu_custom_call.1}
  #allocation0 [shape = 'u32[]', space=smem, size = 0x4, offset = 0x4, fixed_abs, tag = 'smem constant byte address 0x4 - core index']
  #allocation1 [shape = 'u32[144,128]{1,0:T(1,128)}', space=vmem, size = 0x12000, scoped, tag = 'internal scratch']
  %s0 = inlined_call_operand.vmem [shape: f32[16,16], index: 0, kind: input, shape index: {}]
  %s1 = inlined_call_operand.vmem [shape: f32[16,1], index: 1, kind: input, shape index: {}]
  %s2 = inlined_call_operand.vmem [shape: bf16[16,128], index: 2, kind: input, shape index: {}]
  %s3 = inlined_call_operand.vmem [shape: f32[1,128], index: 3, kind: input, shape index: {}]
  %s4 = inlined_call_operand.vmem [shape: f32[1,128], index: 4, kind: input, shape index: {}]
  %s5 = inlined_call_operand.vmem [shape: bf16[128,128], index: 5, kind: input, shape index: {}]
  %s6 = inlined_call_operand.vmem [shape: f32[1,128], index: 6, kind: input, shape index: {}]
  %s7 = inlined_call_operand.vmem [shape: bf16[128,16], index: 7, kind: input, shape index: {}]
  %s8 = inlined_call_operand.vmem [shape: f32[1,16], index: 8, kind: input, shape index: {}]
  %s9 = inlined_call_operand.hbm [shape: f32[16,16], index: 9, kind: output, shape index: {}]
  %s10 = sld [smem:[#allocation0]]
  $region46: #{tpu_custom_call.1} parent=0
    _
  %s12 = ssub.s32 1, %s10
  %s13 = scalar_select 0, %s12, %s10
  $region1: #{tpu_custom_call.1} parent=0
    #allocation2 [shape = 'u8[8192]{0}', space=vmem, size = 0x2000, scoped, tag = 'output window, operand 0, single buffered']
    #allocation3 [shape = 's32[1]{0}', space=sflag, size = 0x4, scoped, tag = 'scoped memory for tpu_custom_call.1']
    %14 = vsyncpa [#allocation3], 0
    // Predicated region
    $region2: #{tpu_custom_call.1} parent=1 // pred_check
      _
    $region3: #{tpu_custom_call.1} parent=1 // pred_check_branch
      %16 = sbr.rel (0) target = $region5
    $region4: #{tpu_custom_call.1} parent=1 // pred_region
      _
    $region5: #{tpu_custom_call.1} parent=1 // pred_fallthru
      _
    // Predicated region
    $region6: #{tpu_custom_call.1} parent=1 // pred_check
      _
    $region7: #{tpu_custom_call.1} parent=1 // pred_check_branch
      %18 = sbr.rel (0) target = $region9
    $region8: #{tpu_custom_call.1} parent=1 // pred_region
      _
    $region9: #{tpu_custom_call.1} parent=1 // pred_fallthru
      _
    // Predicated region
    $region10: #{tpu_custom_call.1} parent=1 // pred_check
      _
    $region11: #{tpu_custom_call.1} parent=1 // pred_check_branch
      %20 = sbr.rel (0) target = $region13
    $region12: #{tpu_custom_call.1} parent=1 // pred_region
      _
    $region13: #{tpu_custom_call.1} parent=1 // pred_fallthru
      _
    // Predicated region
    $region14: #{tpu_custom_call.1} parent=1 // pred_check
      _
    $region15: #{tpu_custom_call.1} parent=1 // pred_check_branch
      %22 = sbr.rel (0) target = $region17
    $region16: #{tpu_custom_call.1} parent=1 // pred_region
      _
    $region17: #{tpu_custom_call.1} parent=1 // pred_fallthru
      _
    // Predicated region
    $region18: #{tpu_custom_call.1} parent=1 // pred_check
      _
    $region19: #{tpu_custom_call.1} parent=1 // pred_check_branch
      %24 = sbr.rel (0) target = $region21
    $region20: #{tpu_custom_call.1} parent=1 // pred_region
      _
    $region21: #{tpu_custom_call.1} parent=1 // pred_fallthru
      _
    // Predicated region
    $region22: #{tpu_custom_call.1} parent=1 // pred_check
      _
    $region23: #{tpu_custom_call.1} parent=1 // pred_check_branch
      %26 = sbr.rel (0) target = $region25
    $region24: #{tpu_custom_call.1} parent=1 // pred_region
      _
    $region25: #{tpu_custom_call.1} parent=1 // pred_fallthru
      _
    // Predicated region
    $region26: #{tpu_custom_call.1} parent=1 // pred_check
      _
    $region27: #{tpu_custom_call.1} parent=1 // pred_check_branch
      %28 = sbr.rel (0) target = $region29
    $region28: #{tpu_custom_call.1} parent=1 // pred_region
      _
    $region29: #{tpu_custom_call.1} parent=1 // pred_fallthru
      _
    // Predicated region
    $region30: #{tpu_custom_call.1} parent=1 // pred_check
      _
    $region31: #{tpu_custom_call.1} parent=1 // pred_check_branch
      %30 = sbr.rel (0) target = $region33
    $region32: #{tpu_custom_call.1} parent=1 // pred_region
      _
    $region33: #{tpu_custom_call.1} parent=1 // pred_fallthru
      _
    // Predicated region
    $region34: #{tpu_custom_call.1} parent=1 // pred_check
      _
    $region35: #{tpu_custom_call.1} parent=1 // pred_check_branch
      %32 = sbr.rel (0) target = $region37
    $region36: #{tpu_custom_call.1} parent=1 // pred_region
      _
    $region37: #{tpu_custom_call.1} parent=1 // pred_fallthru
      _
    %v34 = vld [vmem:[%s0] sm:$0xff]
    %v35 = vld [vmem:[%s0 + $0x8] sm:$0xff]
    %v36 = vpack.c.bf16 %v35, %v34
    %v37 = vld [vmem:[%s2] sm:$0xf]
    %v38 = vld [vmem:[%s2 + $0x4] sm:$0xf]
    %v39 = vld [vmem:[%s1] sm:$0xff]
    %v40 = vld [vmem:[%s1 + $0x8] sm:$0xff]
    %v41 = vld [vmem:[%s3] sm:$0x1]
    %43 = vset.pattern.permute.xlu0 0
    %44 = vperm.xlu0 %43, %v39
    %v45 = vpop.permute.xlu0 %44
    %48 = vset.pattern.permute.xlu0 0
    %49 = vperm.xlu0 %48, %v40
    %v50 = vpop.permute.xlu0 %49
    %v53 = vlaneseq
    %v54 = vshrl.u32 %v53, 7
    %v55 = vsub.s32 0, %v54
    %v56 = vrot.slane %v41, %v55
    %v58 = vmul.f32 %v45, %v56
    %v59 = vmul.f32 %v50, %v56
    %v62 = vunpack.c.l.b16 %v37
    %v63 = vunpack.c.l.b16 %v38
    %v64 = vpack.c.b16 %v63, %v62
    %vm66 = vcmask 130048
    %v68 = vsel %vm66, %v36, 0
    %70 = vmatprep.subr.bf16.mxu0 0
    %71 = vmatpush1.bf16.msra.mxu0 %v64
    %72 = vmatprep.subr.bf16.mxu0 0
    %73 = vmatpush1.bf16.msra.mxu0 0
    %74 = vmatprep.subr.bf16.mxu0 0
    %75 = vmatpush1.bf16.msra.mxu0 0
    %76 = vmatprep.subr.bf16.mxu0 0
    %77 = vmatpush1.bf16.msra.mxu0 0
    %78 = vmatprep.subr.bf16.mxu0 0
    %79 = vmatpush1.bf16.msra.mxu0 0
    %80 = vmatprep.subr.bf16.mxu0 0
    %81 = vmatpush1.bf16.msra.mxu0 0
    %82 = vmatprep.subr.bf16.mxu0 0
    %83 = vmatpush1.bf16.msra.mxu0 0
    %84 = vmatprep.subr.bf16.mxu0 0
    %85 = vmatpush1.bf16.msra.mxu0 0
    %86 = vmatprep.subr.bf16.mxu0 0
    %87 = vmatpush1.bf16.msra.mxu0 0
    %88 = vmatprep.subr.bf16.mxu0 0
    %89 = vmatpush1.bf16.msra.mxu0 0
    %90 = vmatprep.subr.bf16.mxu0 0
    %91 = vmatpush1.bf16.msra.mxu0 0
    %92 = vmatprep.subr.bf16.mxu0 0
    %93 = vmatpush1.bf16.msra.mxu0 0
    %94 = vmatprep.subr.bf16.mxu0 0
    %95 = vmatpush1.bf16.msra.mxu0 0
    %96 = vmatprep.subr.bf16.mxu0 0
    %97 = vmatpush1.bf16.msra.mxu0 0
    %98 = vmatprep.subr.bf16.mxu0 0
    %99 = vmatpush1.bf16.msra.mxu0 0
    %100 = vmatprep.subr.bf16.mxu0 0
    %101 = vmatpush1.bf16.msra.mxu0 0
    %102 = vmatprep.mubr.bf16.mxu0 0
    %103 = vmatmul.mubr.bf16.gmra.mrb[0].mxu0 %v68
    %v104 = vpop.f32.mrb[0].mxu0
    %v105 = vadd.f32 %v58, %v104
    %v106 = vpop.f32.mrb[0].mxu0
    %v107 = vpop.f32.mrb[0].mxu0
    %v108 = vadd.f32 %v59, %v107
    %v109 = vpop.f32.mrb[0].mxu0
    %110 = vdwg.mxu0
    %v111 = vld [vmem:[%s4] sm:$0x1]
    %v113 = vlaneseq
    %v114 = vshrl.u32 %v113, 7
    %v115 = vsub.s32 0, %v114
    %v116 = vrot.slane %v111, %v115
    %v118 = vadd.f32 %v105, %v116
    %v119 = vadd.f32 %v108, %v116
    %v120 = vmax.f32 %v118, 0.0
    %v121 = vmax.f32 %v119, 0.0
    %v122 = vpack.c.bf16 %v121, %v120
    %v123 = vld [vmem:[%s5] sm:$0xf]
    %v124 = vld [vmem:[%s5 + $0x4] sm:$0xf]
    %v125 = vld [vmem:[%s5 + $0x8] sm:$0xf]
    %v126 = vld [vmem:[%s5 + $0xc] sm:$0xf]
    %v127 = vld [vmem:[%s5 + $0x10] sm:$0xf]
    %v128 = vld [vmem:[%s5 + $0x14] sm:$0xf]
    %v129 = vld [vmem:[%s5 + $0x18] sm:$0xf]
    %v130 = vld [vmem:[%s5 + $0x1c] sm:$0xf]
    %v131 = vld [vmem:[%s5 + $0x20] sm:$0xf]
    %v132 = vld [vmem:[%s5 + $0x24] sm:$0xf]
    %v133 = vld [vmem:[%s5 + $0x28] sm:$0xf]
    %v134 = vld [vmem:[%s5 + $0x2c] sm:$0xf]
    %v135 = vld [vmem:[%s5 + $0x30] sm:$0xf]
    %v136 = vld [vmem:[%s5 + $0x34] sm:$0xf]
    %v137 = vld [vmem:[%s5 + $0x38] sm:$0xf]
    %v138 = vld [vmem:[%s5 + $0x3c] sm:$0xf]
    %v139 = vld [vmem:[%s6] sm:$0x1]
    %v141 = vlaneseq
    %v142 = vshrl.u32 %v141, 7
    %v143 = vsub.s32 0, %v142
    %v144 = vrot.slane %v139, %v143
    %v162 = vunpack.c.l.b16 %v123
    %v163 = vunpack.c.l.b16 %v124
    %v164 = vunpack.c.l.b16 %v125
    %v165 = vunpack.c.l.b16 %v126
    %v166 = vunpack.c.l.b16 %v127
    %v167 = vunpack.c.l.b16 %v128
    %v168 = vunpack.c.l.b16 %v129
    %v169 = vunpack.c.l.b16 %v130
    %v170 = vunpack.c.l.b16 %v131
    %v171 = vunpack.c.l.b16 %v132
    %v172 = vunpack.c.l.b16 %v133
    %v173 = vunpack.c.l.b16 %v134
    %v174 = vunpack.c.l.b16 %v135
    %v175 = vunpack.c.l.b16 %v136
    %v176 = vunpack.c.l.b16 %v137
    %v177 = vunpack.c.l.b16 %v138
    %v178 = vpack.c.b16 %v163, %v162
    %v179 = vpack.c.b16 %v165, %v164
    %v180 = vpack.c.b16 %v167, %v166
    %v181 = vpack.c.b16 %v169, %v168
    %v182 = vpack.c.b16 %v171, %v170
    %v183 = vpack.c.b16 %v173, %v172
    %v184 = vpack.c.b16 %v175, %v174
    %v185 = vpack.c.b16 %v177, %v176
    %194 = vmatprep.subr.bf16.mxu0 0
    %195 = vmatpush1.bf16.msra.mxu0 %v178
    %196 = vmatprep.subr.bf16.mxu0 0
    %197 = vmatpush1.bf16.msra.mxu0 %v179
    %198 = vmatprep.subr.bf16.mxu0 0
    %199 = vmatpush1.bf16.msra.mxu0 %v180
    %200 = vmatprep.subr.bf16.mxu0 0
    %201 = vmatpush1.bf16.msra.mxu0 %v181
    %202 = vmatprep.subr.bf16.mxu0 0
    %203 = vmatpush1.bf16.msra.mxu0 %v182
    %204 = vmatprep.subr.bf16.mxu0 0
    %205 = vmatpush1.bf16.msra.mxu0 %v183
    %206 = vmatprep.subr.bf16.mxu0 0
    %207 = vmatpush1.bf16.msra.mxu0 %v184
    %208 = vmatprep.subr.bf16.mxu0 0
    %209 = vmatpush1.bf16.msra.mxu0 %v185
    %210 = vmatprep.subr.bf16.mxu0 0
    %211 = vmatpush1.bf16.msra.mxu0 0
    %212 = vmatprep.subr.bf16.mxu0 0
    %213 = vmatpush1.bf16.msra.mxu0 0
    %214 = vmatprep.subr.bf16.mxu0 0
    %215 = vmatpush1.bf16.msra.mxu0 0
    %216 = vmatprep.subr.bf16.mxu0 0
    %217 = vmatpush1.bf16.msra.mxu0 0
    %218 = vmatprep.subr.bf16.mxu0 0
    %219 = vmatpush1.bf16.msra.mxu0 0
    %220 = vmatprep.subr.bf16.mxu0 0
    %221 = vmatpush1.bf16.msra.mxu0 0
    %222 = vmatprep.subr.bf16.mxu0 0
    %223 = vmatpush1.bf16.msra.mxu0 0
    %224 = vmatprep.subr.bf16.mxu0 0
    %225 = vmatpush1.bf16.msra.mxu0 0
    %226 = vmatprep.mubr.bf16.mxu0 0
    %227 = vmatmul.mubr.bf16.gmra.mrb[0].mxu0 %v122
    %v228 = vpop.f32.mrb[0].mxu0
    %v229 = vadd.f32 %v144, %v228
    %v230 = vpop.f32.mrb[0].mxu0
    %v231 = vpop.f32.mrb[0].mxu0
    %v232 = vadd.f32 %v144, %v231
    %v233 = vpop.f32.mrb[0].mxu0
    %234 = vdwg.mxu0
    %v235 = vmax.f32 %v229, 0.0
    %v236 = vmax.f32 %v232, 0.0
    %v237 = vpack.c.bf16 %v236, %v235
    %v238 = vld [vmem:[%s7] sm:$0xf]
    %v239 = vld [vmem:[%s7 + $0x4] sm:$0xf]
    %v240 = vld [vmem:[%s7 + $0x8] sm:$0xf]
    %v241 = vld [vmem:[%s7 + $0xc] sm:$0xf]
    %v242 = vld [vmem:[%s7 + $0x10] sm:$0xf]
    %v243 = vld [vmem:[%s7 + $0x14] sm:$0xf]
    %v244 = vld [vmem:[%s7 + $0x18] sm:$0xf]
    %v245 = vld [vmem:[%s7 + $0x1c] sm:$0xf]
    %v246 = vld [vmem:[%s7 + $0x20] sm:$0xf]
    %v247 = vld [vmem:[%s7 + $0x24] sm:$0xf]
    %v248 = vld [vmem:[%s7 + $0x28] sm:$0xf]
    %v249 = vld [vmem:[%s7 + $0x2c] sm:$0xf]
    %v250 = vld [vmem:[%s7 + $0x30] sm:$0xf]
    %v251 = vld [vmem:[%s7 + $0x34] sm:$0xf]
    %v252 = vld [vmem:[%s7 + $0x38] sm:$0xf]
    %v253 = vld [vmem:[%s7 + $0x3c] sm:$0xf]
    %v254 = vld [vmem:[%s8] sm:$0x1]
    %v256 = vlaneseq
    %v257 = vshrl.u32 %v256, 7
    %v258 = vsub.s32 0, %v257
    %v259 = vrot.slane %v254, %v258
    %v277 = vunpack.c.l.b16 %v238
    %v278 = vunpack.c.l.b16 %v239
    %v279 = vunpack.c.l.b16 %v240
    %v280 = vunpack.c.l.b16 %v241
    %v281 = vunpack.c.l.b16 %v242
    %v282 = vunpack.c.l.b16 %v243
    %v283 = vunpack.c.l.b16 %v244
    %v284 = vunpack.c.l.b16 %v245
    %v285 = vunpack.c.l.b16 %v246
    %v286 = vunpack.c.l.b16 %v247
    %v287 = vunpack.c.l.b16 %v248
    %v288 = vunpack.c.l.b16 %v249
    %v289 = vunpack.c.l.b16 %v250
    %v290 = vunpack.c.l.b16 %v251
    %v291 = vunpack.c.l.b16 %v252
    %v292 = vunpack.c.l.b16 %v253
    %v293 = vpack.c.b16 %v278, %v277
    %v294 = vpack.c.b16 %v280, %v279
    %v295 = vpack.c.b16 %v282, %v281
    %v296 = vpack.c.b16 %v284, %v283
    %v297 = vpack.c.b16 %v286, %v285
    %v298 = vpack.c.b16 %v288, %v287
    %v299 = vpack.c.b16 %v290, %v289
    %v300 = vpack.c.b16 %v292, %v291
    %309 = vmatprep.subr.bf16.mxu0 0
    %310 = vmatpush1.bf16.msra.mxu0 %v293
    %311 = vmatprep.subr.bf16.mxu0 0
    %312 = vmatpush1.bf16.msra.mxu0 %v294
    %313 = vmatprep.subr.bf16.mxu0 0
    %314 = vmatpush1.bf16.msra.mxu0 %v295
    %315 = vmatprep.subr.bf16.mxu0 0
    %316 = vmatpush1.bf16.msra.mxu0 %v296
    %317 = vmatprep.subr.bf16.mxu0 0
    %318 = vmatpush1.bf16.msra.mxu0 %v297
    %319 = vmatprep.subr.bf16.mxu0 0
    %320 = vmatpush1.bf16.msra.mxu0 %v298
    %321 = vmatprep.subr.bf16.mxu0 0
    %322 = vmatpush1.bf16.msra.mxu0 %v299
    %323 = vmatprep.subr.bf16.mxu0 0
    %324 = vmatpush1.bf16.msra.mxu0 %v300
    %325 = vmatprep.subr.bf16.mxu0 0
    %326 = vmatpush1.bf16.msra.mxu0 0
    %327 = vmatprep.subr.bf16.mxu0 0
    %328 = vmatpush1.bf16.msra.mxu0 0
    %329 = vmatprep.subr.bf16.mxu0 0
    %330 = vmatpush1.bf16.msra.mxu0 0
    %331 = vmatprep.subr.bf16.mxu0 0
    %332 = vmatpush1.bf16.msra.mxu0 0
    %333 = vmatprep.subr.bf16.mxu0 0
    %334 = vmatpush1.bf16.msra.mxu0 0
    %335 = vmatprep.subr.bf16.mxu0 0
    %336 = vmatpush1.bf16.msra.mxu0 0
    %337 = vmatprep.subr.bf16.mxu0 0
    %338 = vmatpush1.bf16.msra.mxu0 0
    %339 = vmatprep.subr.bf16.mxu0 0
    %340 = vmatpush1.bf16.msra.mxu0 0
    %341 = vmatprep.mubr.bf16.mxu0 0
    %342 = vmatmul.mubr.bf16.gmra.mrb[0].mxu0 %v237
    %v343 = vpop.f32.mrb[0].mxu0
    %v344 = vadd.f32 %v259, %v343
    %v345 = vpop.f32.mrb[0].mxu0
    %v346 = vpop.f32.mrb[0].mxu0
    %v347 = vadd.f32 %v259, %v346
    %v348 = vpop.f32.mrb[0].mxu0
    %349 = vdwg.mxu0
    %350 = vst.msk [vmem:[#allocation2] sm:$0xff] %vm66, %v344
    %351 = vst.msk [vmem:[#allocation2 + $0x8] sm:$0xff] %vm66, %v347
    // Predicated region
    $region38: #{tpu_custom_call.1} parent=1 // pred_check
      _
    $region39: #{tpu_custom_call.1} parent=1 // pred_check_branch
      %353 = sbr.rel (0) target = $region41
    $region40: #{tpu_custom_call.1} parent=1 // pred_region
      %s355 = ssub.s32 256, 256
      %356 = vsyncadd [#allocation3], %s355
      %s357 = sshll.u32 [#allocation2], 4
      %s358 = int_to_ptr.vmem [resolvable:$true] %s357
      %363 = dma.vmem_to_hbm [thread:$0]  %s358, 256, %s9, [#allocation3], 128, 128, 8
    $region41: #{tpu_custom_call.1} parent=1 // pred_fallthru
      _
    // Predicated region
    $region42: #{tpu_custom_call.1} parent=1 // pred_check
      _
    $region43: #{tpu_custom_call.1} parent=1 // pred_check_branch
      %365 = sbr.rel (0) target = $region45
    $region44: #{tpu_custom_call.1} parent=1 // pred_region
      %366 = dma.done [#allocation3], 256
    $region45: #{tpu_custom_call.1} parent=1 // pred_fallthru
      _
    %367 = vsyncpa [#allocation3], 1

</llo_original>
